<compile_context>
chip_gen: v6e
topology: v6e:2x2x1
jax: 0.10.0
libtpu: 0.0.40
codegen_flags: <defaults>
</compile_context>

<pallas_src>
import functools

import jax
import jax.numpy as jnp
from jax.experimental import pallas as pl
from jax.experimental.pallas import tpu as pltpu


def _keypoint_loss_kernel(stacked_ref, area_ref, inv_sig_ref, out_ref, *, inv_count):
    """One row-tile of the keypoint loss.

    stacked_ref : (5, TM, K)  planes = [pred_x, pred_y, gt_x, gt_y, mask]
    area_ref    : (TM, 1)
    inv_sig_ref : (1, K)      = 1 / (8 * sigmas^2)
    out_ref     : (1, 1)      running sum, finalized to the mean on the last step
    """
    i = pl.program_id(0)

    @pl.when(i == 0)
    def _init():
        out_ref[...] = jnp.zeros_like(out_ref)

    px = stacked_ref[0]          # (TM, K)
    py = stacked_ref[1]
    gx = stacked_ref[2]
    gy = stacked_ref[3]
    mask = stacked_ref[4]
    area = area_ref[...]         # (TM, 1)
    inv_sig = inv_sig_ref[...]   # (1, K)

    n_kpt = float(mask.shape[1])  # static K, matches kpt_mask.shape[1]

    # d = (px - gx)^2 + (py - gy)^2
    dx = px - gx
    dy = py - gy
    d = dx * dx + dy * dy                                     # (TM, K)

    # kpt_loss_factor = K / (sum(mask != 0, dim=1) + 1e-9)
    cnt = jnp.sum((mask != 0.0).astype(jnp.float32), axis=1, keepdims=True)   # (TM, 1)
    factor = n_kpt * pl.reciprocal(cnt + 1e-9, approx=False)                  # (TM, 1)

    # e = d / ((2*sigmas)^2 * (area + 1e-9) * 2)  ==  d * inv_sig * 1/(area+1e-9)
    inv_area = pl.reciprocal(area + 1e-9, approx=False)       # (TM, 1)
    e = d * (inv_sig * inv_area)                               # (TM, K)

    val = factor * ((1.0 - jnp.exp(-e)) * mask)                # (TM, K)
    out_ref[...] += jnp.sum(val).reshape(1, 1)

    @pl.when(i == pl.num_programs(0) - 1)
    def _finalize():
        # mean over the ORIGINAL (unpadded) N*K elements.
        out_ref[...] = out_ref[...] * inv_count


def keypoint_loss(pred_kpts, gt_kpts, kpt_mask, area, sigmas):
    """JAX/Pallas equivalent of KeypointLoss.forward.

    pred_kpts, gt_kpts : (N, K, 2) float32
    kpt_mask           : (N, K)    float32
    area               : (N, 1)    float32
    sigmas             : (K,)      float32
    returns scalar float32
    """
    pred_kpts = jnp.asarray(pred_kpts, jnp.float32)
    gt_kpts = jnp.asarray(gt_kpts, jnp.float32)
    kpt_mask = jnp.asarray(kpt_mask, jnp.float32)
    area = jnp.asarray(area, jnp.float32)
    sigmas = jnp.asarray(sigmas, jnp.float32)

    n, k = kpt_mask.shape

    # Pack everything that is (N, K)-shaped into one stacked operand:
    #   plane 0/1 = pred x/y, plane 2/3 = gt x/y, plane 4 = mask.
    stacked = jnp.concatenate(
        [jnp.moveaxis(pred_kpts, -1, 0),      # (2, N, K)
         jnp.moveaxis(gt_kpts, -1, 0),        # (2, N, K)
         kpt_mask[None, :, :]],               # (1, N, K)
        axis=0)                               # (5, N, K)

    # Fold the fixed sigma constants: 1 / ((2*sigmas)^2 * 2) = 1 / (8 * sigmas^2).
    inv_sig = (1.0 / (8.0 * sigmas * sigmas)).reshape(1, k)

    # Row tiling: biggest tile up to 512 rows, padded rows contribute exactly 0.
    tm = min(512, ((n + 7) // 8) * 8)
    n_pad = ((n + tm - 1) // tm) * tm
    if n_pad != n:
        stacked = jnp.pad(stacked, ((0, 0), (0, n_pad - n), (0, 0)))
        area_p = jnp.pad(area, ((0, n_pad - n), (0, 0)))
    else:
        area_p = area

    grid = (n_pad // tm,)
    kernel = functools.partial(_keypoint_loss_kernel, inv_count=1.0 / float(n * k))

    out = pl.pallas_call(
        kernel,
        out_shape=jax.ShapeDtypeStruct((1, 1), jnp.float32),
        grid=grid,
        in_specs=[
            pl.BlockSpec((5, tm, k), lambda i: (0, i, 0)),   # stacked planes
            pl.BlockSpec((tm, 1), lambda i: (i, 0)),          # area
            pl.BlockSpec((1, k), lambda i: (0, 0)),           # inv_sig
        ],
        out_specs=pl.BlockSpec((1, 1), lambda i: (0, 0)),     # resident accumulator
        compiler_params=pltpu.CompilerParams(
            dimension_semantics=("arbitrary",)),              # axis carries the accumulator
    )(stacked, area_p, inv_sig)
    return out[0, 0]


def _reference_keypoint_loss(pred_kpts, gt_kpts, kpt_mask, area, sigmas):
    """Pure-JAX reference mirroring the PyTorch forward, for validation."""
    d = (pred_kpts[..., 0] - gt_kpts[..., 0]) ** 2 + (pred_kpts[..., 1] - gt_kpts[..., 1]) ** 2
    kpt_loss_factor = kpt_mask.shape[1] / (jnp.sum(kpt_mask != 0, axis=1) + 1e-9)
    e = d / ((2 * sigmas) ** 2 * (area + 1e-9) * 2)
    return jnp.mean(kpt_loss_factor.reshape(-1, 1) * ((1 - jnp.exp(-e)) * kpt_mask))


if __name__ == "__main__":
    key = jax.random.PRNGKey(0)
    k1, k2, k3, k4 = jax.random.split(key, 4)

    N, K = 8, 17  # 8 target objects, 17 COCO-pose keypoints

    # Deterministic "parameters": COCO OKS sigmas (as used by ultralytics pose loss).
    OKS_SIGMA = jnp.array(
        [0.26, 0.25, 0.25, 0.35, 0.35, 0.79, 0.79, 0.72, 0.72, 0.62,
         0.62, 1.07, 1.07, 0.87, 0.87, 0.89, 0.89], dtype=jnp.float32) / 10.0

    pred_kpts = jax.random.uniform(k1, (N, K, 2), jnp.float32) * 64.0
    gt_kpts = jax.random.uniform(k2, (N, K, 2), jnp.float32) * 64.0
    kpt_mask = (jax.random.uniform(k3, (N, K), jnp.float32) > 0.3).astype(jnp.float32)
    area = jax.random.uniform(k4, (N, 1), jnp.float32) * 100.0 + 10.0

    loss = keypoint_loss(pred_kpts, gt_kpts, kpt_mask, area, OKS_SIGMA)
    jax.block_until_ready(loss)

    ref = _reference_keypoint_loss(pred_kpts, gt_kpts, kpt_mask, area, OKS_SIGMA)
    assert jnp.allclose(loss, ref, rtol=1e-5, atol=1e-6), (loss, ref)

    print("KERNEL_OK")
</pallas_src>

<mosaic_0001>
module attributes {stable_mosaic.version = 11 : i64} {
  func.func @_keypoint_loss_kernel(%arg0: i32, %arg1: memref<5x8x17xf32, #tpu.memory_space<vmem>>, %arg2: memref<8x1xf32, #tpu.memory_space<vmem>>, %arg3: memref<1x17xf32, #tpu.memory_space<vmem>>, %arg4: memref<1x1xf32, #tpu.memory_space<vmem>>) attributes {dimension_semantics = [#tpu.dimension_semantics<arbitrary>], iteration_bounds = array<i64: 1>, scalar_prefetch = 0 : i64, scratch_operands = 0 : i64, tpu.core_type = #tpu.core_type<tc>, window_params = [{transform_indices = @transform_0, window_bounds = array<i64: 5, 8, 17>}, {transform_indices = @transform_1, window_bounds = array<i64: 8, 1>}, {pipeline_mode = #tpu.pipeline_mode<synchronous>, transform_indices = @transform_2, window_bounds = array<i64: 1, 17>}, {pipeline_mode = #tpu.pipeline_mode<synchronous>, transform_indices = @transform_3, window_bounds = array<i64: 1, 1>}]} {
    %c0_i32 = arith.constant 0 : i32
    %0 = arith.cmpi eq, %arg0, %c0_i32 : i32
    %1 = arith.extui %0 : i1 to i32
    %c0_i32_0 = arith.constant 0 : i32
    %2 = arith.cmpi ne, %1, %c0_i32_0 : i32
    scf.if %2 {
      %cst_28 = arith.constant 0.000000e+00 : f32
      %57 = vector.broadcast %cst_28 : f32 to vector<1x1xf32>
      %c0_29 = arith.constant 0 : index
      %c0_30 = arith.constant 0 : index
      %58 = vector.load %arg4[%c0_29, %c0_30] : memref<1x1xf32, #tpu.memory_space<vmem>>, vector<1x1xf32>
      tpu.vector_store %arg4[%c0_29, %c0_30], %57 {strides = array<i32>} : memref<1x1xf32, #tpu.memory_space<vmem>>, vector<1x1xf32>,
    } else {
    }
    %c0 = arith.constant 0 : index
    %c0_1 = arith.constant 0 : index
    %c0_2 = arith.constant 0 : index
    %3 = vector.load %arg1[%c0, %c0_1, %c0_2] : memref<5x8x17xf32, #tpu.memory_space<vmem>>, vector<1x8x17xf32>
    %4 = vector.shape_cast %3 : vector<1x8x17xf32> to vector<8x17xf32>
    %c1 = arith.constant 1 : index
    %c0_3 = arith.constant 0 : index
    %c0_4 = arith.constant 0 : index
    %5 = vector.load %arg1[%c1, %c0_3, %c0_4] : memref<5x8x17xf32, #tpu.memory_space<vmem>>, vector<1x8x17xf32>
    %6 = vector.shape_cast %5 : vector<1x8x17xf32> to vector<8x17xf32>
    %c2 = arith.constant 2 : index
    %c0_5 = arith.constant 0 : index
    %c0_6 = arith.constant 0 : index
    %7 = vector.load %arg1[%c2, %c0_5, %c0_6] : memref<5x8x17xf32, #tpu.memory_space<vmem>>, vector<1x8x17xf32>
    %8 = vector.shape_cast %7 : vector<1x8x17xf32> to vector<8x17xf32>
    %c3 = arith.constant 3 : index
    %c0_7 = arith.constant 0 : index
    %c0_8 = arith.constant 0 : index
    %9 = vector.load %arg1[%c3, %c0_7, %c0_8] : memref<5x8x17xf32, #tpu.memory_space<vmem>>, vector<1x8x17xf32>
    %10 = vector.shape_cast %9 : vector<1x8x17xf32> to vector<8x17xf32>
    %c4 = arith.constant 4 : index
    %c0_9 = arith.constant 0 : index
    %c0_10 = arith.constant 0 : index
    %11 = vector.load %arg1[%c4, %c0_9, %c0_10] : memref<5x8x17xf32, #tpu.memory_space<vmem>>, vector<1x8x17xf32>
    %12 = vector.shape_cast %11 : vector<1x8x17xf32> to vector<8x17xf32>
    %c0_11 = arith.constant 0 : index
    %c0_12 = arith.constant 0 : index
    %13 = vector.load %arg2[%c0_11, %c0_12] : memref<8x1xf32, #tpu.memory_space<vmem>>, vector<8x1xf32>
    %c0_13 = arith.constant 0 : index
    %c0_14 = arith.constant 0 : index
    %14 = vector.load %arg3[%c0_13, %c0_14] : memref<1x17xf32, #tpu.memory_space<vmem>>, vector<1x17xf32>
    %15 = arith.subf %4, %8 : vector<8x17xf32>
    %16 = arith.subf %6, %10 : vector<8x17xf32>
    %17 = arith.mulf %15, %15 : vector<8x17xf32>
    %18 = arith.mulf %16, %16 : vector<8x17xf32>
    %19 = arith.addf %17, %18 : vector<8x17xf32>
    %cst = arith.constant 0.000000e+00 : f32
    %20 = vector.broadcast %cst : f32 to vector<8x17xf32>
    %21 = arith.cmpf one, %12, %20 : vector<8x17xf32>
    %22 = arith.extui %21 : vector<8x17xi1> to vector<8x17xi32>
    %23 = arith.sitofp %22 : vector<8x17xi32> to vector<8x17xf32>
    %cst_15 = arith.constant dense<0.000000e+00> : vector<8xf32>
    %24 = vector.multi_reduction <add>, %23, %cst_15 [1] : vector<8x17xf32> to vector<8xf32>
    %25 = vector.shape_cast %24 : vector<8xf32> to vector<8x1xf32>
    %cst_16 = arith.constant 9.99999971E-10 : f32
    %26 = vector.broadcast %cst_16 : f32 to vector<8x1xf32>
    %27 = arith.addf %25, %26 : vector<8x1xf32>
    %28 = tpu.reciprocal %27 : vector<8x1xf32> -> vector<8x1xf32>
    %cst_17 = arith.constant 1.700000e+01 : f32
    %29 = vector.broadcast %cst_17 : f32 to vector<8x1xf32>
    %30 = arith.mulf %29, %28 : vector<8x1xf32>
    %cst_18 = arith.constant 9.99999971E-10 : f32
    %31 = vector.broadcast %cst_18 : f32 to vector<8x1xf32>
    %32 = arith.addf %13, %31 : vector<8x1xf32>
    %33 = tpu.reciprocal %32 : vector<8x1xf32> -> vector<8x1xf32>
    %34 = vector.broadcast %14 : vector<1x17xf32> to vector<8x17xf32>
    %35 = vector.broadcast %33 : vector<8x1xf32> to vector<8x17xf32>
    %36 = arith.mulf %34, %35 : vector<8x17xf32>
    %37 = arith.mulf %19, %36 : vector<8x17xf32>
    %cst_19 = arith.constant 0.000000e+00 : f32
    %38 = vector.broadcast %cst_19 : f32 to vector<8x17xf32>
    %39 = arith.subf %38, %37 : vector<8x17xf32>
    %40 = math.exp %39 : vector<8x17xf32>
    %cst_20 = arith.constant 1.000000e+00 : f32
    %41 = vector.broadcast %cst_20 : f32 to vector<8x17xf32>
    %42 = arith.subf %41, %40 : vector<8x17xf32>
    %43 = arith.mulf %42, %12 : vector<8x17xf32>
    %44 = vector.broadcast %30 : vector<8x1xf32> to vector<8x17xf32>
    %45 = arith.mulf %44, %43 : vector<8x17xf32>
    %c0_21 = arith.constant 0 : index
    %c0_22 = arith.constant 0 : index
    %46 = vector.load %arg4[%c0_21, %c0_22] : memref<1x1xf32, #tpu.memory_space<vmem>>, vector<1x1xf32>
    %47 = vector.shape_cast %45 : vector<8x17xf32> to vector<1x8x17xf32>
    %cst_23 = arith.constant dense<0.000000e+00> : vector<1xf32>
    %48 = vector.multi_reduction <add>, %47, %cst_23 [1, 2] : vector<1x8x17xf32> to vector<1xf32>
    %49 = vector.shape_cast %48 : vector<1xf32> to vector<1x1x1xf32>
    %50 = vector.extract %49[0, 0, 0] : f32 from vector<1x1x1xf32>
    %51 = vector.broadcast %50 : f32 to vector<1x1xf32>
    %52 = arith.addf %46, %51 : vector<1x1xf32>
    %c0_24 = arith.constant 0 : index
    %c0_25 = arith.constant 0 : index
    %53 = vector.load %arg4[%c0_24, %c0_25] : memref<1x1xf32, #tpu.memory_space<vmem>>, vector<1x1xf32>
    tpu.vector_store %arg4[%c0_24, %c0_25], %52 {strides = array<i32>} : memref<1x1xf32, #tpu.memory_space<vmem>>, vector<1x1xf32>,
    %c0_i32_26 = arith.constant 0 : i32
    %54 = arith.cmpi eq, %arg0, %c0_i32_26 : i32
    %55 = arith.extui %54 : i1 to i32
    %c0_i32_27 = arith.constant 0 : i32
    %56 = arith.cmpi ne, %55, %c0_i32_27 : i32
    scf.if %56 {
      %c0_28 = arith.constant 0 : index
      %c0_29 = arith.constant 0 : index
      %57 = vector.load %arg4[%c0_28, %c0_29] : memref<1x1xf32, #tpu.memory_space<vmem>>, vector<1x1xf32>
      %cst_30 = arith.constant 0.0073529412 : f32
      %58 = vector.broadcast %cst_30 : f32 to vector<1x1xf32>
      %59 = arith.mulf %57, %58 : vector<1x1xf32>
      %c0_31 = arith.constant 0 : index
      %c0_32 = arith.constant 0 : index
      %60 = vector.load %arg4[%c0_31, %c0_32] : memref<1x1xf32, #tpu.memory_space<vmem>>, vector<1x1xf32>
      tpu.vector_store %arg4[%c0_31, %c0_32], %59 {strides = array<i32>} : memref<1x1xf32, #tpu.memory_space<vmem>>, vector<1x1xf32>,
    } else {
    }
    return
  }
  func.func @transform_0(%arg0: i32) -> (i32, i32, i32) {
    %c0_i32 = arith.constant 0 : i32
    %c0_i32_0 = arith.constant 0 : i32
    %c0_i32_1 = arith.constant 0 : i32
    return %c0_i32, %arg0, %c0_i32_0 : i32, i32, i32
  }
  func.func @transform_1(%arg0: i32) -> (i32, i32) {
    %c0_i32 = arith.constant 0 : i32
    %c0_i32_0 = arith.constant 0 : i32
    return %arg0, %c0_i32 : i32, i32
  }
  func.func @transform_2(%arg0: i32) -> (i32, i32) {
    %c0_i32 = arith.constant 0 : i32
    %c0_i32_0 = arith.constant 0 : i32
    %c0_i32_1 = arith.constant 0 : i32
    return %c0_i32, %c0_i32_0 : i32, i32
  }
  func.func @transform_3(%arg0: i32) -> (i32, i32) {
    %c0_i32 = arith.constant 0 : i32
    %c0_i32_0 = arith.constant 0 : i32
    %c0_i32_1 = arith.constant 0 : i32
    return %c0_i32, %c0_i32_0 : i32, i32
  }
}

</mosaic_0001>

<llo_original>
// kernel: tpu_custom_call.1
$region0: #{tpu_custom_call.1}
  #allocation0 [shape = 'u32[]', space=smem, size = 0x4, offset = 0x4, fixed_abs, tag = 'smem constant byte address 0x4 - core index']
  #allocation1 [shape = 'u32[144,128]{1,0:T(1,128)}', space=vmem, size = 0x12000, scoped, tag = 'internal scratch']
  %s0 = inlined_call_operand.hbm [shape: f32[5,8,17], index: 0, kind: input, shape index: {}]
  %s1 = inlined_call_operand.vmem [shape: f32[8,1], index: 1, kind: input, shape index: {}]
  %s2 = inlined_call_operand.vmem [shape: f32[1,17], index: 2, kind: input, shape index: {}]
  %s3 = inlined_call_operand.hbm [shape: f32[1,1], index: 3, kind: output, shape index: {}]
  %s4 = sld [smem:[#allocation0]]
  $region34: #{tpu_custom_call.1} parent=0
    _
  %s6 = ssub.s32 1, %s4
  %s7 = scalar_select 0, %s6, %s4
  $region1: #{tpu_custom_call.1} parent=0
    #allocation2 [shape = 'u8[20480]{0}', space=vmem, size = 0x5000, scoped, tag = 'input window, operand 0, single buffered']
    #allocation3 [shape = 's32[1]{0}', space=sflag, size = 0x4, scoped, tag = 'scoped memory for tpu_custom_call.1']
    #allocation4 [shape = 's32[1]{0}', space=sflag, size = 0x4, scoped, tag = 'scoped memory for tpu_custom_call.1']
    #allocation5 [shape = 'u8[512]{0}', space=vmem, size = 0x400, scoped, tag = 'output window, operand 0, single buffered']
    %8 = vsyncpa [#allocation3], 0
    %9 = vsyncpa [#allocation4], 0
    // Predicated region
    $region2: #{tpu_custom_call.1} parent=1 // pred_check
      _
    $region3: #{tpu_custom_call.1} parent=1 // pred_check_branch
      %11 = sbr.rel (0) target = $region5
    $region4: #{tpu_custom_call.1} parent=1 // pred_region
      %s13 = ssub.s32 640, 640
      %14 = vsyncadd [#allocation3], %s13
      %s15 = sshll.u32 [#allocation2], 4
      %s16 = int_to_ptr.vmem [resolvable:$true] %s15
      %21 = dma.hbm_to_vmem [thread:$0]  %s0, 640, %s16, [#allocation3], 128, 128, 8
    $region5: #{tpu_custom_call.1} parent=1 // pred_fallthru
      _
    // Predicated region
    $region6: #{tpu_custom_call.1} parent=1 // pred_check
      _
    $region7: #{tpu_custom_call.1} parent=1 // pred_check_branch
      %23 = sbr.rel (0) target = $region9
    $region8: #{tpu_custom_call.1} parent=1 // pred_region
      _
    $region9: #{tpu_custom_call.1} parent=1 // pred_fallthru
      _
    // Predicated region
    $region10: #{tpu_custom_call.1} parent=1 // pred_check
      _
    $region11: #{tpu_custom_call.1} parent=1 // pred_check_branch
      %25 = sbr.rel (0) target = $region13
    $region12: #{tpu_custom_call.1} parent=1 // pred_region
      _
    $region13: #{tpu_custom_call.1} parent=1 // pred_fallthru
      _
    // Predicated region
    $region14: #{tpu_custom_call.1} parent=1 // pred_check
      _
    $region15: #{tpu_custom_call.1} parent=1 // pred_check_branch
      %27 = sbr.rel (0) target = $region17
    $region16: #{tpu_custom_call.1} parent=1 // pred_region
      %28 = dma.done [#allocation3], 640
    $region17: #{tpu_custom_call.1} parent=1 // pred_fallthru
      _
    %p29 = scmp.eq.s32.totalorder 0, 0
    // Predicated region
    $region18: #{tpu_custom_call.1} parent=1 // pred_check
      %p30 = pneg %p29
    $region19: #{tpu_custom_call.1} parent=1 // pred_check_branch
      %32 = sbr.rel (%p30) target = $region21
    $region20: #{tpu_custom_call.1} parent=1 // pred_region
      %vm33 = vcmask 0
      %34 = vst.msk [vmem:[#allocation5] sm:$0x1] %vm33, 0.0
    $region21: #{tpu_custom_call.1} parent=1 // pred_fallthru
      _
    %v35 = vld [vmem:[#allocation2] sm:$0xff]
    %s36 = scalar_lea.vmem [#allocation2], 8
    %v37 = vld [vmem:[%s36] sm:$0xff]
    %s38 = scalar_lea.vmem [#allocation2], 16
    %v39 = vld [vmem:[%s38] sm:$0xff]
    %s40 = scalar_lea.vmem [#allocation2], 24
    %v41 = vld [vmem:[%s40] sm:$0xff]
    %s42 = scalar_lea.vmem [#allocation2], 32
    %v43 = vld [vmem:[%s42] sm:$0xff]
    %v44 = vld [vmem:[%s1] sm:$0xff]
    %v45 = vld [vmem:[%s2] sm:$0x1]
    %v46 = vsub.f32 %v35, %v39
    %v47 = vsub.f32 %v37, %v41
    %v48 = vmul.f32 %v46, %v46
    %v49 = vmul.f32 %v47, %v47
    %v50 = vadd.f32 %v48, %v49
    %vm51 = vcmp.ne.f32.partialorder %v43, 0.0
    %v52 = vsel %vm51, 1, 0
    %v53 = vcvt.s32.f32 %v52
    %vm54 = vcmask 138240
    %v55 = vsel %vm54, %v53, 0.0
    %56 = vadd.xlane.f32.xlu0 %v55
    %v57 = vpop.xlane.xlu0 %56
    %v58 = vadd.f32 %v57, 1e-09
    %v59 = vrcp.pop %v58
    %v60 = vmul.f32 %v59, 17.0
    %v61 = vadd.f32 %v44, 1e-09
    %v62 = vrcp.pop %v61
    %v64 = vlaneseq
    %v65 = vshrl.u32 %v64, 7
    %v66 = vsub.s32 0, %v65
    %v67 = vrot.slane %v45, %v66
    %70 = vset.pattern.permute.xlu0 0
    %71 = vperm.xlu0 %70, %v62
    %v72 = vpop.permute.xlu0 %71
    %v74 = vmul.f32 %v67, %v72
    %v75 = vmul.f32 %v50, %v74
    %v76 = vsub.f32 0.0, %v75
    %v77 = vmul.f32 %v76, 1.442695
    %v78 = vpow.pop %v77
    %v79 = vsub.f32 1.0, %v78
    %v80 = vmul.f32 %v79, %v43
    %v81 = vmul.f32 %v60, %v80
    %v82 = vld [vmem:[#allocation5] sm:$0x1]
    %v83 = vsel %vm54, %v81, 0.0
    %84 = vadd.xlane.f32.xlu0 %v83
    %v85 = vpop.xlane.xlu0 %84
    %v86 = vrot.slane %v85, 4
    %v87 = vadd.f32 %v85, %v86
    %v88 = vrot.slane %v87, 2
    %v89 = vadd.f32 %v87, %v88
    %v90 = vrot.slane %v89, 1
    %v91 = vadd.f32 %v89, %v90
    %s92 = vtos %v91
    %v93 = vstv %s92
    %v94 = vadd.f32 %v82, %v93
    %vm95 = vcmask 0
    %96 = vst.msk [vmem:[#allocation5] sm:$0x1] %vm95, %v94
    // Predicated region
    $region22: #{tpu_custom_call.1} parent=1 // pred_check
      %p97 = pneg %p29
    $region23: #{tpu_custom_call.1} parent=1 // pred_check_branch
      %99 = sbr.rel (%p97) target = $region25
    $region24: #{tpu_custom_call.1} parent=1 // pred_region
      %v100 = vld [vmem:[#allocation5] sm:$0x1]
      %v101 = vmul.f32 %v100, 0.007352941
      %102 = vst.msk [vmem:[#allocation5] sm:$0x1] %vm95, %v101
    $region25: #{tpu_custom_call.1} parent=1 // pred_fallthru
      _
    // Predicated region
    $region26: #{tpu_custom_call.1} parent=1 // pred_check
      _
    $region27: #{tpu_custom_call.1} parent=1 // pred_check_branch
      %104 = sbr.rel (0) target = $region29
    $region28: #{tpu_custom_call.1} parent=1 // pred_region
      %s106 = ssub.s32 16, 16
      %107 = vsyncadd [#allocation4], %s106
      %s109 = sshll.u32 [#allocation5], 4
      %s110 = int_to_ptr.vmem [resolvable:$true] %s109
      %112 = dma.vmem_to_hbm [thread:$0]  %s110, 16, %s3, [#allocation4]
    $region29: #{tpu_custom_call.1} parent=1 // pred_fallthru
      _
    // Predicated region
    $region30: #{tpu_custom_call.1} parent=1 // pred_check
      _
    $region31: #{tpu_custom_call.1} parent=1 // pred_check_branch
      %114 = sbr.rel (0) target = $region33
    $region32: #{tpu_custom_call.1} parent=1 // pred_region
      %115 = dma.done [#allocation4], 16
    $region33: #{tpu_custom_call.1} parent=1 // pred_fallthru
      _
    %116 = vsyncpa [#allocation3], 1
    %117 = vsyncpa [#allocation4], 1

</llo_original>
